<compile_context>
chip_gen: v5e
topology: v5e:2x2
jax: 0.10.0
libtpu: 0.0.40
codegen_flags: <defaults>
</compile_context>

<pallas_src>
import jax
import jax.numpy as jnp
from jax.experimental import pallas as pl
from jax.experimental.pallas import tpu as pltpu


def _make_delta_kernel(n_inputs, tb):
    """Kernel for 1 complex + (n_inputs - 1) parts, one batch tile of `tb` rows per step."""

    def kernel(*refs):
        x_refs = refs[:n_inputs]                      # each (tb, H) f32
        w1_ref, b1_ref, w2_ref, b2_ref, o_ref = refs[n_inputs:]

        # Fused LHS: concatenate the n inputs along the sublane axis (VMEM only) and cast to
        # bf16 on the VPU; W1 is likewise cast after its (single, resident) f32 DMA.
        x = jnp.concatenate([r[...] for r in x_refs], axis=0).astype(jnp.bfloat16)  # (n*tb, H)
        w1 = w1_ref[...].astype(jnp.bfloat16)                                       # (H, H)

        # One MXU matmul for all n energies; bias + ReLU on the VPU in f32.
        h = jnp.dot(x, w1, preferred_element_type=jnp.float32)                      # (n*tb, H)
        h = jnp.maximum(h + b1_ref[...], 0.0)

        # Signed combine via sublane slices (tb is a multiple of 8 -> tile aligned):
        #   d = h_comp - sum_p h_part
        d = h[:tb]
        for p in range(1, n_inputs):
            d = d - h[p * tb:(p + 1) * tb]                                          # (tb, H)

        # Output projection: VPU multiply + lane reduction instead of a 1-column MXU matmul.
        #   delta(b) = sum_k d(b, k) * w2(k) + b2 * (2 - n_inputs)
        delta = jnp.sum(d * w2_ref[...], axis=-1, keepdims=True)                    # (tb, 1)
        delta = delta + b2_ref[0, 0] * jnp.float32(2 - n_inputs)

        o_ref[...] = delta.astype(o_ref.dtype)                                      # (tb, 1)

    return kernel


def delta_strategy(comp, parts, w1, b1, w2, b2):
    """comp: (B, H); parts: list of (B, H). Returns (B, 1) delta energy (float32)."""
    parts = list(parts)
    n = 1 + len(parts)
    B, H = comp.shape

    # Batch tile: full batch when small; 256-row tiles (parallel grid / megacore) when large.
    if B <= 256:
        tb = B
    else:
        assert B % 256 == 0, "large-batch path expects B to be a multiple of 256"
        tb = 256
    grid = (B // tb,)

    xs = [comp] + parts                              # f32, DMA'd directly; cast in-kernel
    b1_f = b1.reshape(1, H)
    w2_row = w2.reshape(1, H)
    b2_f = b2.reshape(1, 1)

    x_spec = pl.BlockSpec((tb, H), lambda i: (i, 0))
    in_specs = (
        [x_spec] * n
        + [
            pl.BlockSpec((H, H), lambda i: (0, 0)),   # W1: resident across the grid
            pl.BlockSpec((1, H), lambda i: (0, 0)),   # b1
            pl.BlockSpec((1, H), lambda i: (0, 0)),   # w2 row
            pl.BlockSpec(memory_space=pltpu.MemorySpace.SMEM),  # b2 scalar
        ]
    )
    out_spec = pl.BlockSpec((tb, 1), lambda i: (i, 0))

    flops = 2 * n * B * H * H + 4 * n * B * H + 3 * B * H
    bytes_accessed = (n * B * H + H * H + 2 * H + 1) * 4 + B * 4
    cost = pl.CostEstimate(flops=flops, transcendentals=0, bytes_accessed=bytes_accessed)

    return pl.pallas_call(
        _make_delta_kernel(n, tb),
        out_shape=jax.ShapeDtypeStruct((B, 1), jnp.float32),
        grid=grid,
        in_specs=in_specs,
        out_specs=out_spec,
        compiler_params=pltpu.CompilerParams(dimension_semantics=("parallel",)),
        cost_estimate=cost,
    )(*xs, w1, b1_f, w2_row, b2_f)


if __name__ == "__main__":
    B, H = 8, 128          # batch (sublane axis), hidden/feature (lane axis)
    NUM_PARTS = 2          # e.g. protein + ligand

    key = jax.random.PRNGKey(0)
    k_comp, k_parts, k_w1, k_b1, k_w2, k_b2 = jax.random.split(key, 6)

    comp = jax.random.normal(k_comp, (B, H), dtype=jnp.float32)
    parts = [
        jax.random.normal(jax.random.fold_in(k_parts, p), (B, H), dtype=jnp.float32)
        for p in range(NUM_PARTS)
    ]

    # Deterministic energy_func parameters (synthetic, not a checkpoint).
    w1 = jax.random.normal(k_w1, (H, H), dtype=jnp.float32) * 0.05
    b1 = jax.random.normal(k_b1, (1, H), dtype=jnp.float32) * 0.1
    w2 = jax.random.normal(k_w2, (H, 1), dtype=jnp.float32) * 0.05
    b2 = jax.random.normal(k_b2, (1, 1), dtype=jnp.float32) * 0.1

    out = delta_strategy(comp, parts, w1, b1, w2, b2)
    out = jax.block_until_ready(out)

    # Pure-JAX reference of DeltaStrategy.forward at matching (bf16 MXU operand) precision.
    def energy_ref(x):
        h = jnp.dot(x.astype(jnp.bfloat16), w1.astype(jnp.bfloat16),
                    preferred_element_type=jnp.float32)
        h = jnp.maximum(h + b1, 0.0)
        return h @ w2 + b2

    ref = energy_ref(comp) - sum(energy_ref(p) for p in parts)

    assert out.shape == (B, 1)
    assert jnp.allclose(out, ref, atol=1e-3, rtol=1e-3), (out, ref)

    print("KERNEL_OK")
</pallas_src>

<mosaic_0001>
module attributes {stable_mosaic.version = 11 : i64} {
  func.func @kernel(%arg0: i32, %arg1: memref<8x128xf32, #tpu.memory_space<vmem>>, %arg2: memref<8x128xf32, #tpu.memory_space<vmem>>, %arg3: memref<8x128xf32, #tpu.memory_space<vmem>>, %arg4: memref<128x128xf32, #tpu.memory_space<vmem>>, %arg5: memref<1x128xf32, #tpu.memory_space<vmem>>, %arg6: memref<1x128xf32, #tpu.memory_space<vmem>>, %arg7: memref<1x1xf32, #tpu.memory_space<smem>>, %arg8: memref<8x1xf32, #tpu.memory_space<vmem>>) attributes {dimension_semantics = [#tpu.dimension_semantics<parallel>], iteration_bounds = array<i64: 1>, scalar_prefetch = 0 : i64, scratch_operands = 0 : i64, tpu.core_type = #tpu.core_type<tc>, window_params = [{transform_indices = @transform_0, window_bounds = array<i64: 8, 128>}, {transform_indices = @transform_1, window_bounds = array<i64: 8, 128>}, {transform_indices = @transform_2, window_bounds = array<i64: 8, 128>}, {pipeline_mode = #tpu.pipeline_mode<synchronous>, transform_indices = @transform_3, window_bounds = array<i64: 128, 128>}, {pipeline_mode = #tpu.pipeline_mode<synchronous>, transform_indices = @transform_4, window_bounds = array<i64: 1, 128>}, {pipeline_mode = #tpu.pipeline_mode<synchronous>, transform_indices = @transform_5, window_bounds = array<i64: 1, 128>}, {transform_indices = @transform_6, window_bounds = array<i64: 1, 1>}, {transform_indices = @transform_7, window_bounds = array<i64: 8, 1>}]} {
    %c0 = arith.constant 0 : index
    %c0_0 = arith.constant 0 : index
    %0 = vector.load %arg1[%c0, %c0_0] : memref<8x128xf32, #tpu.memory_space<vmem>>, vector<8x128xf32>
    %c0_1 = arith.constant 0 : index
    %c0_2 = arith.constant 0 : index
    %1 = vector.load %arg2[%c0_1, %c0_2] : memref<8x128xf32, #tpu.memory_space<vmem>>, vector<8x128xf32>
    %c0_3 = arith.constant 0 : index
    %c0_4 = arith.constant 0 : index
    %2 = vector.load %arg3[%c0_3, %c0_4] : memref<8x128xf32, #tpu.memory_space<vmem>>, vector<8x128xf32>
    %3 = tpu.concatenate %0, %1, %2 in 0 : vector<8x128xf32>, vector<8x128xf32>, vector<8x128xf32> -> vector<24x128xf32>
    %4 = arith.truncf %3 : vector<24x128xf32> to vector<24x128xbf16>
    %c0_5 = arith.constant 0 : index
    %c0_6 = arith.constant 0 : index
    %5 = vector.load %arg4[%c0_5, %c0_6] : memref<128x128xf32, #tpu.memory_space<vmem>>, vector<128x128xf32>
    %6 = arith.truncf %5 : vector<128x128xf32> to vector<128x128xbf16>
    %cst = arith.constant dense<0.000000e+00> : vector<24x128xf32>
    %7 = tpu.matmul %4, %6, %cst {dimension_numbers = #tpu.dot_dimension_numbers<[1], [0], [0], [1], [0, 0, 1, 1], [], []>} : vector<24x128xbf16>, vector<128x128xbf16>, vector<24x128xf32> -> vector<24x128xf32>
    %c0_7 = arith.constant 0 : index
    %c0_8 = arith.constant 0 : index
    %8 = vector.load %arg5[%c0_7, %c0_8] : memref<1x128xf32, #tpu.memory_space<vmem>>, vector<1x128xf32>
    %9 = vector.broadcast %8 : vector<1x128xf32> to vector<24x128xf32>
    %10 = arith.addf %7, %9 : vector<24x128xf32>
    %cst_9 = arith.constant 0.000000e+00 : f32
    %11 = vector.broadcast %cst_9 : f32 to vector<24x128xf32>
    %12 = arith.maximumf %10, %11 : vector<24x128xf32>
    %13 = vector.extract_strided_slice %12 {offsets = [0, 0], sizes = [8, 128], strides = [1, 1]} : vector<24x128xf32> to vector<8x128xf32>
    %14 = vector.extract_strided_slice %12 {offsets = [8, 0], sizes = [8, 128], strides = [1, 1]} : vector<24x128xf32> to vector<8x128xf32>
    %15 = arith.subf %13, %14 : vector<8x128xf32>
    %16 = vector.extract_strided_slice %12 {offsets = [16, 0], sizes = [8, 128], strides = [1, 1]} : vector<24x128xf32> to vector<8x128xf32>
    %17 = arith.subf %15, %16 : vector<8x128xf32>
    %c0_10 = arith.constant 0 : index
    %c0_11 = arith.constant 0 : index
    %18 = vector.load %arg6[%c0_10, %c0_11] : memref<1x128xf32, #tpu.memory_space<vmem>>, vector<1x128xf32>
    %19 = vector.broadcast %18 : vector<1x128xf32> to vector<8x128xf32>
    %20 = arith.mulf %17, %19 : vector<8x128xf32>
    %cst_12 = arith.constant dense<0.000000e+00> : vector<8xf32>
    %21 = vector.multi_reduction <add>, %20, %cst_12 [1] : vector<8x128xf32> to vector<8xf32>
    %22 = vector.shape_cast %21 : vector<8xf32> to vector<8x1xf32>
    %c0_13 = arith.constant 0 : index
    %c0_14 = arith.constant 0 : index
    %23 = memref.load %arg7[%c0_13, %c0_14] : memref<1x1xf32, #tpu.memory_space<smem>>
    %cst_15 = arith.constant -1.000000e+00 : f32
    %24 = arith.mulf %23, %cst_15 : f32
    %25 = vector.broadcast %24 : f32 to vector<8x1xf32>
    %26 = arith.addf %22, %25 : vector<8x1xf32>
    %c0_16 = arith.constant 0 : index
    %c0_17 = arith.constant 0 : index
    %27 = vector.load %arg8[%c0_16, %c0_17] : memref<8x1xf32, #tpu.memory_space<vmem>>, vector<8x1xf32>
    tpu.vector_store %arg8[%c0_16, %c0_17], %26 {strides = array<i32>} : memref<8x1xf32, #tpu.memory_space<vmem>>, vector<8x1xf32>,
    return
  }
  func.func @transform_0(%arg0: i32) -> (i32, i32) {
    %c0_i32 = arith.constant 0 : i32
    %c0_i32_0 = arith.constant 0 : i32
    return %arg0, %c0_i32 : i32, i32
  }
  func.func @transform_1(%arg0: i32) -> (i32, i32) {
    %c0_i32 = arith.constant 0 : i32
    %c0_i32_0 = arith.constant 0 : i32
    return %arg0, %c0_i32 : i32, i32
  }
  func.func @transform_2(%arg0: i32) -> (i32, i32) {
    %c0_i32 = arith.constant 0 : i32
    %c0_i32_0 = arith.constant 0 : i32
    return %arg0, %c0_i32 : i32, i32
  }
  func.func @transform_3(%arg0: i32) -> (i32, i32) {
    %c0_i32 = arith.constant 0 : i32
    %c0_i32_0 = arith.constant 0 : i32
    %c0_i32_1 = arith.constant 0 : i32
    return %c0_i32, %c0_i32_0 : i32, i32
  }
  func.func @transform_4(%arg0: i32) -> (i32, i32) {
    %c0_i32 = arith.constant 0 : i32
    %c0_i32_0 = arith.constant 0 : i32
    %c0_i32_1 = arith.constant 0 : i32
    return %c0_i32, %c0_i32_0 : i32, i32
  }
  func.func @transform_5(%arg0: i32) -> (i32, i32) {
    %c0_i32 = arith.constant 0 : i32
    %c0_i32_0 = arith.constant 0 : i32
    %c0_i32_1 = arith.constant 0 : i32
    return %c0_i32, %c0_i32_0 : i32, i32
  }
  func.func @transform_6(%arg0: i32) -> (i32, i32) {
    %c0_i32 = arith.constant 0 : i32
    %c0_i32_0 = arith.constant 0 : i32
    %c0_i32_1 = arith.constant 0 : i32
    return %c0_i32, %c0_i32_0 : i32, i32
  }
  func.func @transform_7(%arg0: i32) -> (i32, i32) {
    %c0_i32 = arith.constant 0 : i32
    %c0_i32_0 = arith.constant 0 : i32
    return %arg0, %c0_i32 : i32, i32
  }
}

</mosaic_0001>

<llo_original>
// kernel: tpu_custom_call.1
$region0: #{tpu_custom_call.1}
  #allocation0 [shape = 'u32[]', space=smem, size = 0x4, offset = 0x4, fixed_abs, tag = 'smem constant byte address 0x4 - core index']
  #allocation1 [shape = 'u32[72,128]{1,0:T(1,128)}', space=vmem, size = 0x9000, scoped, tag = 'internal scratch']
  #allocation2 [shape = 'f32[1,1]{1,0:T(1,128)S(6)}', space=smem, size = 0x200, scoped, tag = 'scoped memory for tpu_custom_call.1']
  %s0 = inlined_call_operand.hbm [shape: f32[8,128], index: 0, kind: input, shape index: {}]
  %s1 = inlined_call_operand.hbm [shape: f32[8,128], index: 1, kind: input, shape index: {}]
  %s2 = inlined_call_operand.hbm [shape: f32[8,128], index: 2, kind: input, shape index: {}]
  %s3 = inlined_call_operand.hbm [shape: f32[128,128], index: 3, kind: input, shape index: {}]
  %s4 = inlined_call_operand.vmem [shape: f32[1,128], index: 4, kind: input, shape index: {}]
  %s5 = inlined_call_operand.vmem [shape: f32[1,128], index: 5, kind: input, shape index: {}]
  %s6 = inlined_call_operand.<no memory space> [shape: f32[1,1], index: 6, kind: input, shape index: {}]
  %s7 = inlined_call_operand.vmem [shape: f32[8,1], index: 7, kind: output, shape index: {}]
  %s8 = sld [smem:[#allocation0]]
  $region54: #{tpu_custom_call.1} parent=0
    _
  %s10 = ssub.s32 1, %s8
  %s11 = scalar_select 0, %s10, %s8
  %12 = sst [smem:[#allocation2]] %s6
  $region1: #{tpu_custom_call.1} parent=0
    #allocation3 [shape = 'u8[4096]{0}', space=vmem, size = 0x1000, scoped, tag = 'input window, operand 0, single buffered']
    #allocation4 [shape = 's32[1]{0}', space=sflag, size = 0x4, scoped, tag = 'scoped memory for tpu_custom_call.1']
    #allocation5 [shape = 'u8[4096]{0}', space=vmem, size = 0x1000, scoped, tag = 'input window, operand 1, single buffered']
    #allocation6 [shape = 's32[1]{0}', space=sflag, size = 0x4, scoped, tag = 'scoped memory for tpu_custom_call.1']
    #allocation7 [shape = 'u8[4096]{0}', space=vmem, size = 0x1000, scoped, tag = 'input window, operand 2, single buffered']
    #allocation8 [shape = 'u8[65536]{0}', space=vmem, size = 0x10000, scoped, tag = 'input window, operand 3, single buffered']
    #allocation9 [shape = 's32[1]{0}', space=sflag, size = 0x4, scoped, tag = 'scoped memory for tpu_custom_call.1']
    %13 = vsyncpa [#allocation4], 0
    %14 = vsyncpa [#allocation6], 0
    %15 = vsyncpa [#allocation9], 0
    // Predicated region
    $region2: #{tpu_custom_call.1} parent=1 // pred_check
      _
    $region3: #{tpu_custom_call.1} parent=1 // pred_check_branch
      %17 = sbr.rel (0) target = $region5
    $region4: #{tpu_custom_call.1} parent=1 // pred_region
      %19 = vsyncadd [#allocation4], 0
      %s21 = sshll.u32 %s0, 4
      %s22 = int_to_ptr.hbm [resolvable:$true] %s21
      %s23 = sshll.u32 [#allocation3], 4
      %s24 = int_to_ptr.vmem [resolvable:$true] %s23
      %26 = dma.hbm_to_vmem [thread:$0]  %s22, 128, %s24, [#allocation4]
    $region5: #{tpu_custom_call.1} parent=1 // pred_fallthru
      _
    // Predicated region
    $region6: #{tpu_custom_call.1} parent=1 // pred_check
      _
    $region7: #{tpu_custom_call.1} parent=1 // pred_check_branch
      %28 = sbr.rel (0) target = $region9
    $region8: #{tpu_custom_call.1} parent=1 // pred_region
      %30 = vsyncadd [#allocation6], 0
      %s32 = sshll.u32 %s1, 4
      %s33 = int_to_ptr.hbm [resolvable:$true] %s32
      %s34 = sshll.u32 [#allocation5], 4
      %s35 = int_to_ptr.vmem [resolvable:$true] %s34
      %37 = dma.hbm_to_vmem [thread:$0]  %s33, 128, %s35, [#allocation6]
    $region9: #{tpu_custom_call.1} parent=1 // pred_fallthru
      _
    // Predicated region
    $region10: #{tpu_custom_call.1} parent=1 // pred_check
      _
    $region11: #{tpu_custom_call.1} parent=1 // pred_check_branch
      %39 = sbr.rel (0) target = $region13
    $region12: #{tpu_custom_call.1} parent=1 // pred_region
      %41 = vsyncadd [#allocation6], 0
      %s43 = sshll.u32 %s2, 4
      %s44 = int_to_ptr.hbm [resolvable:$true] %s43
      %s45 = sshll.u32 [#allocation7], 4
      %s46 = int_to_ptr.vmem [resolvable:$true] %s45
      %48 = dma.hbm_to_vmem [thread:$0]  %s44, 128, %s46, [#allocation6]
    $region13: #{tpu_custom_call.1} parent=1 // pred_fallthru
      _
    // Predicated region
    $region14: #{tpu_custom_call.1} parent=1 // pred_check
      _
    $region15: #{tpu_custom_call.1} parent=1 // pred_check_branch
      %50 = sbr.rel (0) target = $region17
    $region16: #{tpu_custom_call.1} parent=1 // pred_region
      %52 = vsyncadd [#allocation9], 0
      %s53 = sshll.u32 %s3, 4
      %s54 = int_to_ptr.hbm [resolvable:$true] %s53
      %s55 = sshll.u32 [#allocation8], 4
      %s56 = int_to_ptr.vmem [resolvable:$true] %s55
      %61 = dma.hbm_to_vmem [thread:$0]  %s54, 2048, %s56, [#allocation9], 128, 128, 8
    $region17: #{tpu_custom_call.1} parent=1 // pred_fallthru
      _
    // Predicated region
    $region18: #{tpu_custom_call.1} parent=1 // pred_check
      _
    $region19: #{tpu_custom_call.1} parent=1 // pred_check_branch
      %63 = sbr.rel (0) target = $region21
    $region20: #{tpu_custom_call.1} parent=1 // pred_region
      _
    $region21: #{tpu_custom_call.1} parent=1 // pred_fallthru
      _
    // Predicated region
    $region22: #{tpu_custom_call.1} parent=1 // pred_check
      _
    $region23: #{tpu_custom_call.1} parent=1 // pred_check_branch
      %65 = sbr.rel (0) target = $region25
    $region24: #{tpu_custom_call.1} parent=1 // pred_region
      _
    $region25: #{tpu_custom_call.1} parent=1 // pred_fallthru
      _
    // Predicated region
    $region26: #{tpu_custom_call.1} parent=1 // pred_check
      _
    $region27: #{tpu_custom_call.1} parent=1 // pred_check_branch
      %67 = sbr.rel (0) target = $region29
    $region28: #{tpu_custom_call.1} parent=1 // pred_region
      _
    $region29: #{tpu_custom_call.1} parent=1 // pred_fallthru
      _
    // Predicated region
    $region30: #{tpu_custom_call.1} parent=1 // pred_check
      _
    $region31: #{tpu_custom_call.1} parent=1 // pred_check_branch
      %69 = sbr.rel (0) target = $region33
    $region32: #{tpu_custom_call.1} parent=1 // pred_region
      %71 = dma.done [#allocation4], 128
    $region33: #{tpu_custom_call.1} parent=1 // pred_fallthru
      _
    // Predicated region
    $region34: #{tpu_custom_call.1} parent=1 // pred_check
      _
    $region35: #{tpu_custom_call.1} parent=1 // pred_check_branch
      %73 = sbr.rel (0) target = $region37
    $region36: #{tpu_custom_call.1} parent=1 // pred_region
      %75 = dma.done [#allocation6], 128
    $region37: #{tpu_custom_call.1} parent=1 // pred_fallthru
      _
    // Predicated region
    $region38: #{tpu_custom_call.1} parent=1 // pred_check
      _
    $region39: #{tpu_custom_call.1} parent=1 // pred_check_branch
      %77 = sbr.rel (0) target = $region41
    $region40: #{tpu_custom_call.1} parent=1 // pred_region
      %79 = dma.done [#allocation6], 128
    $region41: #{tpu_custom_call.1} parent=1 // pred_fallthru
      _
    // Predicated region
    $region42: #{tpu_custom_call.1} parent=1 // pred_check
      _
    $region43: #{tpu_custom_call.1} parent=1 // pred_check_branch
      %81 = sbr.rel (0) target = $region45
    $region44: #{tpu_custom_call.1} parent=1 // pred_region
      %83 = dma.done [#allocation9], 2048
    $region45: #{tpu_custom_call.1} parent=1 // pred_fallthru
      _
    %v84 = vld [vmem:[#allocation3] sm:$0xff]
    %v85 = vld [vmem:[#allocation5] sm:$0xff]
    %v86 = vld [vmem:[#allocation7] sm:$0xff]
    %v87 = vpack.c.bf16 %v85, %v84
    %v88 = vpack.c.bf16 %v86, %v86
    %v89 = vld [vmem:[#allocation8] sm:$0xff]
    %v90 = vld [vmem:[#allocation8 + $0x8] sm:$0xff]
    %v91 = vld [vmem:[#allocation8 + $0x10] sm:$0xff]
    %v92 = vld [vmem:[#allocation8 + $0x18] sm:$0xff]
    %v93 = vld [vmem:[#allocation8 + $0x20] sm:$0xff]
    %v94 = vld [vmem:[#allocation8 + $0x28] sm:$0xff]
    %v95 = vld [vmem:[#allocation8 + $0x30] sm:$0xff]
    %v96 = vld [vmem:[#allocation8 + $0x38] sm:$0xff]
    %v97 = vld [vmem:[#allocation8 + $0x40] sm:$0xff]
    %v98 = vld [vmem:[#allocation8 + $0x48] sm:$0xff]
    %v99 = vld [vmem:[#allocation8 + $0x50] sm:$0xff]
    %v100 = vld [vmem:[#allocation8 + $0x58] sm:$0xff]
    %v101 = vld [vmem:[#allocation8 + $0x60] sm:$0xff]
    %v102 = vld [vmem:[#allocation8 + $0x68] sm:$0xff]
    %v103 = vld [vmem:[#allocation8 + $0x70] sm:$0xff]
    %v104 = vld [vmem:[#allocation8 + $0x78] sm:$0xff]
    %v105 = vpack.c.bf16 %v90, %v89
    %v106 = vpack.c.bf16 %v92, %v91
    %v107 = vpack.c.bf16 %v94, %v93
    %v108 = vpack.c.bf16 %v96, %v95
    %v109 = vpack.c.bf16 %v98, %v97
    %v110 = vpack.c.bf16 %v100, %v99
    %v111 = vpack.c.bf16 %v102, %v101
    %v112 = vpack.c.bf16 %v104, %v103
    %v113 = vld [vmem:[%s4] sm:$0x1]
    %v115 = vperm.slane %v113, 0
    %117 = vmatpush.bf16.msra.mxu0 %v112
    %118 = vmatpush.bf16.msra.mxu0 %v111
    %119 = vmatpush.bf16.msra.mxu0 %v110
    %120 = vmatpush.bf16.msra.mxu0 %v109
    %121 = vmatpush.bf16.msra.mxu0 %v108
    %122 = vmatpush.bf16.msra.mxu0 %v107
    %123 = vmatpush.bf16.msra.mxu0 %v106
    %124 = vmatpush.bf16.msra.mxu0 %v105
    %125 = vmatmul.bf16.gmra.mxu0 %v87
    %v126 = vpop.f32.mrf.mxu0
    %v127 = vadd.f32 %v115, %v126
    %v128 = vpop.f32.mrf.mxu0
    %v129 = vadd.f32 %v115, %v128
    %130 = vmatmul.bf16.gmra.mxu0 %v88
    %v131 = vpop.f32.mrf.mxu0
    %v132 = vadd.f32 %v115, %v131
    %v133 = vpop.f32.mrf.mxu0
    %134 = vdwg.mxu0
    %v135 = vmax.f32 %v127, 0.0
    %v136 = vmax.f32 %v129, 0.0
    %v137 = vmax.f32 %v132, 0.0
    %v138 = vsub.f32 %v135, %v136
    %v139 = vsub.f32 %v138, %v137
    %v140 = vld [vmem:[%s5] sm:$0x1]
    %v142 = vperm.slane %v140, 0
    %v144 = vmul.f32 %v139, %v142
    %145 = vadd.xlane.f32.xlu0 %v144
    %v146 = vpop.xlane.xlu0 %145
    %s147 = sld [smem:[#allocation2]]
    %s148 = smul.f32 %s147, -1.0
    %v149 = vstv %s148
    %v150 = vadd.f32 %v146, %v149
    %vm151 = vcmask 7168
    %152 = vst.msk [vmem:[%s7] sm:$0xff] %vm151, %v150
    // Predicated region
    $region46: #{tpu_custom_call.1} parent=1 // pred_check
      _
    $region47: #{tpu_custom_call.1} parent=1 // pred_check_branch
      %154 = sbr.rel (0) target = $region49
    $region48: #{tpu_custom_call.1} parent=1 // pred_region
      _
    $region49: #{tpu_custom_call.1} parent=1 // pred_fallthru
      _
    // Predicated region
    $region50: #{tpu_custom_call.1} parent=1 // pred_check
      _
    $region51: #{tpu_custom_call.1} parent=1 // pred_check_branch
      %156 = sbr.rel (0) target = $region53
    $region52: #{tpu_custom_call.1} parent=1 // pred_region
      _
    $region53: #{tpu_custom_call.1} parent=1 // pred_fallthru
      _
    %157 = vsyncpa [#allocation4], 1
    %158 = vsyncpa [#allocation6], 1
    %159 = vsyncpa [#allocation9], 1

</llo_original>
